<compile_context>
chip_gen: v7x
topology: tpu7x:2x2x1
jax: 0.10.0
libtpu: 0.0.40
codegen_flags: <defaults>
</compile_context>

<pallas_src>
import functools

import jax
import jax.numpy as jnp
from jax import lax
from jax.experimental import pallas as pl
from jax.experimental.pallas import tpu as pltpu

LANE = 128                 # vreg lane width
SUBLANE = 8                # f32 sublane tile
CHUNK_ROWS = 256           # in-kernel streaming chunk (128 KiB f32 per operand)
SPLIT_ROWS = 2048          # >1 MiB f32 per input: use >=2 blocks (v7x: 2 TCs)
MAX_TILE_ROWS = 8192       # 4 MiB f32 per input block
VMEM_LIMIT_BYTES = 48 << 20  # fits v7x's 64 MiB physical VMEM with headroom


def _round_up(v, m):
    return -(-v // m) * m


def _choose_tiling(rows_main, sub_m):
    """Return (tile_rows, chunk_rows, num_blocks); tile_rows*num_blocks >= rows_main."""
    rows = _round_up(rows_main, sub_m)
    if rows <= CHUNK_ROWS:
        # Single small block, single chunk (no in-kernel loop needed).
        return rows, rows, 1
    if rows <= SPLIT_ROWS:
        # <= ~1 MiB f32 per input: one block is fine on any chip.
        return _round_up(rows, CHUNK_ROWS), CHUNK_ROWS, 1
    if rows <= 2 * MAX_TILE_ROWS:
        # Two blocks so the "parallel" grid axis shards across v7x's 2 TCs
        # (harmless extra step on the single-TC v5e/v6e).
        return _round_up(-(-rows // 2), CHUNK_ROWS), CHUNK_ROWS, 2
    return MAX_TILE_ROWS, CHUNK_ROWS, -(-rows // MAX_TILE_ROWS)


def _l1_partial_kernel(x_ref, y_ref, o_ref, *, tile_rows, chunk_rows,
                       rows_main, needs_mask):
    """Per-block partial sums of |x - y|, folded to one (8, 128) f32 slab.

    Streams the (tile_rows, 128) block in (chunk_rows, 128) chunks so no
    tile-sized temporary is ever materialized in VMEM; the only carried state
    is a single (8, 128) f32 accumulator.  Rows >= rows_main (only possible in
    the last, ragged block) are masked to zero BEFORE the summation.
    """
    i = pl.program_id(0)
    num_chunks = tile_rows // chunk_rows

    if needs_mask:
        valid_rows = rows_main - i * tile_rows           # > 0 for every block
        row_iota = lax.broadcasted_iota(jnp.int32, (chunk_rows, LANE), 0)

    def chunk_partial(r0):
        d = jnp.abs(x_ref[pl.ds(r0, chunk_rows), :].astype(jnp.float32)
                    - y_ref[pl.ds(r0, chunk_rows), :].astype(jnp.float32))
        if needs_mask:
            # Select (never multiply) so NaN/Inf garbage in OOB rows is dropped.
            d = jnp.where(row_iota < (valid_rows - r0), d, 0.0)
        # (chunk_rows,128) -> (chunk_rows//8, 8, 128): layout-free split; the
        # reduction over the leading axis is pure VPU adds (no XLU).
        return jnp.sum(d.reshape(-1, SUBLANE, LANE), axis=0)

    if num_chunks == 1:
        o_ref[...] = chunk_partial(0)[None]
    else:
        def body(c, acc):
            r0 = pl.multiple_of(c * chunk_rows, chunk_rows)
            return acc + chunk_partial(r0)

        acc = lax.fori_loop(0, num_chunks, body,
                            jnp.zeros((SUBLANE, LANE), jnp.float32), unroll=4)
        o_ref[...] = acc[None]


def _l1_sum_pallas(x2d, y2d):
    """Sum of |x2d - y2d| over a (rows_main, 128) view, computed in f32."""
    rows_main = x2d.shape[0]
    itemsize = max(x2d.dtype.itemsize, y2d.dtype.itemsize)
    # Sub-32-bit dtypes pack along sublanes: keep row tiles fully packed.
    sub_m = SUBLANE * max(1, 4 // itemsize)       # 8 (f32), 16 (bf16), 32 (int8)

    tile_rows, chunk_rows, num_blocks = _choose_tiling(rows_main, sub_m)
    needs_mask = (num_blocks * tile_rows != rows_main)

    kernel = functools.partial(
        _l1_partial_kernel, tile_rows=tile_rows, chunk_rows=chunk_rows,
        rows_main=rows_main, needs_mask=needs_mask)

    def in_spec():
        if num_blocks >= 3:
            # Back-to-back DMA pipeline: a third buffer hides the issue gap.
            return pl.BlockSpec((tile_rows, LANE), lambda i: (i, 0),
                                pipeline_mode=pl.Buffered(3))
        return pl.BlockSpec((tile_rows, LANE), lambda i: (i, 0))

    n_main = rows_main * LANE
    partial = pl.pallas_call(
        kernel,
        out_shape=jax.ShapeDtypeStruct((num_blocks, SUBLANE, LANE), jnp.float32),
        grid=(num_blocks,),
        in_specs=[in_spec(), in_spec()],
        out_specs=pl.BlockSpec((1, SUBLANE, LANE), lambda i: (i, 0, 0)),
        compiler_params=pltpu.CompilerParams(
            dimension_semantics=("parallel",),
            vmem_limit_bytes=VMEM_LIMIT_BYTES),
        cost_estimate=pl.CostEstimate(
            flops=3 * n_main,
            bytes_accessed=n_main * (x2d.dtype.itemsize + y2d.dtype.itemsize)
            + num_blocks * SUBLANE * LANE * 4,
            transcendentals=0),
    )(x2d, y2d)

    # Tiny epilogue: cross-block reduce of (num_blocks, 8, 128) partials.
    return jnp.sum(partial, dtype=jnp.float32)


def l1_loss(logits, labels):
    """Pallas TPU equivalent of torch.nn.L1Loss() (reduction='mean')."""
    assert logits.shape == labels.shape, "L1Loss requires matching shapes"
    n = logits.size

    x = jnp.ravel(logits)          # contiguous reshape: no copy
    y = jnp.ravel(labels)

    n_main = (n // LANE) * LANE    # bulk handled by the Pallas kernel
    rows_main = n_main // LANE
    if rows_main < SUBLANE:        # tiny input: kernel launch would dominate
        n_main, rows_main = 0, 0

    total = jnp.zeros((), jnp.float32)
    if rows_main:
        if n_main == n:
            xm, ym = x, y          # zero-copy path (n multiple of 128)
        else:
            # Rare: n not a multiple of 128 — one prefix copy for the 2-D view.
            # TODO(synk): a 1-D-block in-kernel masked path would remove this copy.
            xm, ym = x[:n_main], y[:n_main]
        total = _l1_sum_pallas(xm.reshape(rows_main, LANE),
                               ym.reshape(rows_main, LANE))

    if n_main < n:                 # <128-element ragged tail (or tiny input)
        total = total + jnp.sum(jnp.abs(x[n_main:].astype(jnp.float32)
                                        - y[n_main:].astype(jnp.float32)))

    return total / jnp.float32(n)


if __name__ == "__main__":
    key = jax.random.PRNGKey(0)

    cases = [
        ((2, 4, 16, 16), jnp.float32),   # 2048 elems: single-block Pallas path
        ((3, 5, 8, 32), jnp.float32),    # 3840 elems: ragged rows -> masked path
        ((2, 8, 128), jnp.bfloat16),     # bf16 inputs (dtype-aware alignment)
        ((5, 7, 9), jnp.float32),        # 315 elems: tiny -> pure-jnp tail path
    ]

    for idx, (shape, dtype) in enumerate(cases):
        k1, k2 = jax.random.split(jax.random.fold_in(key, idx))
        logits = jax.random.normal(k1, shape, dtype=jnp.float32).astype(dtype)
        labels = jax.random.normal(k2, shape, dtype=jnp.float32).astype(dtype)

        loss = l1_loss(logits, labels)
        jax.block_until_ready(loss)

        ref = jnp.mean(jnp.abs(logits.astype(jnp.float32)
                               - labels.astype(jnp.float32)))
        assert jnp.allclose(loss, ref, rtol=1e-5, atol=1e-6), (shape, dtype, loss, ref)

    print("KERNEL_OK")
</pallas_src>

<mosaic_0001>
module attributes {stable_mosaic.version = 11 : i64} {
  func.func @_l1_partial_kernel(%arg0: i32, %arg1: memref<16x128xf32, #tpu.memory_space<vmem>>, %arg2: memref<16x128xf32, #tpu.memory_space<vmem>>, %arg3: memref<1x8x128xf32, #tpu.memory_space<vmem>>) attributes {dimension_semantics = [#tpu.dimension_semantics<parallel>], iteration_bounds = array<i64: 1>, scalar_prefetch = 0 : i64, scratch_operands = 0 : i64, tpu.core_type = #tpu.core_type<tc>, window_params = [{transform_indices = @transform_0, window_bounds = array<i64: 16, 128>}, {transform_indices = @transform_1, window_bounds = array<i64: 16, 128>}, {transform_indices = @transform_2, window_bounds = array<i64: 1, 8, 128>}]} {
    %c0 = arith.constant 0 : index
    %c0_0 = arith.constant 0 : index
    %0 = vector.load %arg1[%c0, %c0_0] : memref<16x128xf32, #tpu.memory_space<vmem>>, vector<16x128xf32>
    %c0_1 = arith.constant 0 : index
    %c0_2 = arith.constant 0 : index
    %1 = vector.load %arg2[%c0_1, %c0_2] : memref<16x128xf32, #tpu.memory_space<vmem>>, vector<16x128xf32>
    %2 = arith.subf %0, %1 : vector<16x128xf32>
    %3 = math.absf %2 : vector<16x128xf32>
    %4 = vector.shape_cast %3 : vector<16x128xf32> to vector<2x8x128xf32>
    %cst = arith.constant dense<0.000000e+00> : vector<8x128xf32>
    %5 = vector.multi_reduction <add>, %4, %cst [0] : vector<2x8x128xf32> to vector<8x128xf32>
    %6 = vector.shape_cast %5 : vector<8x128xf32> to vector<1x8x128xf32>
    %c0_3 = arith.constant 0 : index
    %c0_4 = arith.constant 0 : index
    %c0_5 = arith.constant 0 : index
    %7 = vector.load %arg3[%c0_3, %c0_4, %c0_5] : memref<1x8x128xf32, #tpu.memory_space<vmem>>, vector<1x8x128xf32>
    tpu.vector_store %arg3[%c0_3, %c0_4, %c0_5], %6 {strides = array<i32>} : memref<1x8x128xf32, #tpu.memory_space<vmem>>, vector<1x8x128xf32>,
    return
  }
  func.func @transform_0(%arg0: i32) -> (i32, i32) {
    %c0_i32 = arith.constant 0 : i32
    %c0_i32_0 = arith.constant 0 : i32
    return %arg0, %c0_i32 : i32, i32
  }
  func.func @transform_1(%arg0: i32) -> (i32, i32) {
    %c0_i32 = arith.constant 0 : i32
    %c0_i32_0 = arith.constant 0 : i32
    return %arg0, %c0_i32 : i32, i32
  }
  func.func @transform_2(%arg0: i32) -> (i32, i32, i32) {
    %c0_i32 = arith.constant 0 : i32
    %c0_i32_0 = arith.constant 0 : i32
    %c0_i32_1 = arith.constant 0 : i32
    return %arg0, %c0_i32, %c0_i32_0 : i32, i32, i32
  }
}

</mosaic_0001>

<llo_original>
// kernel: tpu_custom_call.1
$region0: #{tpu_custom_call.1}
  #allocation0 [shape = 'u32[]', space=smem, size = 0x4, offset = 0x4, fixed_abs, tag = 'smem constant byte address 0x4 - core index']
  #allocation1 [shape = 'u32[144,128]{1,0:T(1,128)}', space=vmem, size = 0x12000, scoped, tag = 'internal scratch']
  %s0 = inlined_call_operand.hbm [shape: f32[16,128], index: 0, kind: input, shape index: {}]
  %s1 = inlined_call_operand.hbm [shape: f32[16,128], index: 1, kind: input, shape index: {}]
  %s2 = inlined_call_operand.hbm [shape: f32[1,8,128], index: 2, kind: output, shape index: {}]
  %s3 = sld [smem:[#allocation0]]
  $region26: #{tpu_custom_call.1} parent=0
    _
  %s5 = ssub.s32 1, %s3
  %s6 = scalar_select 0, %s5, %s3
  $region1: #{tpu_custom_call.1} parent=0
    #allocation2 [shape = 'u8[8192]{0}', space=vmem, size = 0x2000, scoped, tag = 'input window, operand 0, single buffered']
    #allocation3 [shape = 's32[1]{0}', space=sflag, size = 0x4, scoped, tag = 'scoped memory for tpu_custom_call.1']
    #allocation4 [shape = 's32[1]{0}', space=sflag, size = 0x4, scoped, tag = 'scoped memory for tpu_custom_call.1']
    #allocation5 [shape = 'u8[8192]{0}', space=vmem, size = 0x2000, scoped, tag = 'input window, operand 1, single buffered']
    #allocation6 [shape = 's32[1]{0}', space=sflag, size = 0x4, scoped, tag = 'scoped memory for tpu_custom_call.1']
    #allocation7 [shape = 'u8[4096]{0}', space=vmem, size = 0x1000, scoped, tag = 'output window, operand 0, single buffered']
    %7 = vsyncpa [#allocation3], 0
    %8 = vsyncpa [#allocation6], 0
    %9 = vsyncpa [#allocation4], 0
    // Predicated region
    $region2: #{tpu_custom_call.1} parent=1 // pred_check
      _
    $region3: #{tpu_custom_call.1} parent=1 // pred_check_branch
      %11 = sbr.rel (0) target = $region5
    $region4: #{tpu_custom_call.1} parent=1 // pred_region
      %s13 = ssub.s32 256, 256
      %14 = vsyncadd [#allocation3], %s13
      %s15 = sshll.u32 [#allocation2], 4
      %s16 = int_to_ptr.vmem [resolvable:$true] %s15
      %21 = dma.hbm_to_vmem [thread:$0]  %s0, 256, %s16, [#allocation3], 128, 128, 8
    $region5: #{tpu_custom_call.1} parent=1 // pred_fallthru
      _
    // Predicated region
    $region6: #{tpu_custom_call.1} parent=1 // pred_check
      _
    $region7: #{tpu_custom_call.1} parent=1 // pred_check_branch
      %23 = sbr.rel (0) target = $region9
    $region8: #{tpu_custom_call.1} parent=1 // pred_region
      %s25 = ssub.s32 256, 256
      %26 = vsyncadd [#allocation6], %s25
      %s27 = sshll.u32 [#allocation5], 4
      %s28 = int_to_ptr.vmem [resolvable:$true] %s27
      %33 = dma.hbm_to_vmem [thread:$0]  %s1, 256, %s28, [#allocation6], 128, 128, 8
    $region9: #{tpu_custom_call.1} parent=1 // pred_fallthru
      _
    // Predicated region
    $region10: #{tpu_custom_call.1} parent=1 // pred_check
      _
    $region11: #{tpu_custom_call.1} parent=1 // pred_check_branch
      %35 = sbr.rel (0) target = $region13
    $region12: #{tpu_custom_call.1} parent=1 // pred_region
      %36 = dma.done [#allocation3], 256
    $region13: #{tpu_custom_call.1} parent=1 // pred_fallthru
      _
    // Predicated region
    $region14: #{tpu_custom_call.1} parent=1 // pred_check
      _
    $region15: #{tpu_custom_call.1} parent=1 // pred_check_branch
      %38 = sbr.rel (0) target = $region17
    $region16: #{tpu_custom_call.1} parent=1 // pred_region
      %39 = dma.done [#allocation6], 256
    $region17: #{tpu_custom_call.1} parent=1 // pred_fallthru
      _
    %v40 = vld [vmem:[#allocation2] sm:$0xff]
    %v41 = vld [vmem:[#allocation2 + $0x8] sm:$0xff]
    %v42 = vld [vmem:[#allocation5] sm:$0xff]
    %v43 = vld [vmem:[#allocation5 + $0x8] sm:$0xff]
    %v44 = vsub.f32 %v40, %v42
    %v45 = vsub.f32 %v41, %v43
    %v46 = vand.u32 2147483647, %v44
    %v47 = vand.u32 2147483647, %v45
    %v48 = vadd.f32 %v46, %v47
    %49 = vst [vmem:[#allocation7] sm:$0xff] %v48
    // Predicated region
    $region18: #{tpu_custom_call.1} parent=1 // pred_check
      _
    $region19: #{tpu_custom_call.1} parent=1 // pred_check_branch
      %51 = sbr.rel (0) target = $region21
    $region20: #{tpu_custom_call.1} parent=1 // pred_region
      %s53 = ssub.s32 128, 128
      %54 = vsyncadd [#allocation4], %s53
      %s56 = sshll.u32 [#allocation7], 4
      %s57 = int_to_ptr.vmem [resolvable:$true] %s56
      %59 = dma.vmem_to_hbm [thread:$0]  %s57, 128, %s2, [#allocation4]
    $region21: #{tpu_custom_call.1} parent=1 // pred_fallthru
      _
    // Predicated region
    $region22: #{tpu_custom_call.1} parent=1 // pred_check
      _
    $region23: #{tpu_custom_call.1} parent=1 // pred_check_branch
      %61 = sbr.rel (0) target = $region25
    $region24: #{tpu_custom_call.1} parent=1 // pred_region
      %62 = dma.done [#allocation4], 128
    $region25: #{tpu_custom_call.1} parent=1 // pred_fallthru
      _
    %63 = vsyncpa [#allocation3], 1
    %64 = vsyncpa [#allocation6], 1
    %65 = vsyncpa [#allocation4], 1

</llo_original>
